<compile_context>
chip_gen: v6e
topology: v6e:2x2x1
jax: 0.10.0
libtpu: 0.0.40
codegen_flags: <defaults>
</compile_context>

<pallas_src>
import math

import numpy as np
import jax
import jax.numpy as jnp
from jax import lax
from jax.experimental import pallas as pl
from jax.experimental.pallas import tpu as pltpu  # noqa: F401  (TPU backend)

# Small test shapes consistent with the module.
N, C_IN, H, W = 2, 4, 16, 16
C_OUT = 16
KH = KW = 3
PH, PW = H // 2, W // 2        # 8, 8   spatial dims after 2x2/2 max-pool
HS, WS = PH + 1, PW + 1        # 9, 9   padded-input spatial dims / 2
S2D_C = 4 * C_IN               # 16     channels after 2x2 space-to-depth
POOL = 4                       # number of positions in a 2x2 pool window
ROWS = N * PH * PW             # 128    pooled output pixels (matmul M dim)
K_DIM = POOL * S2D_C           # 64     contraction dim of the fused conv dot


def conv_relu_pool_kernel(lhs_ref, w_ref, b_ref, o_ref):
    """Fused conv(3x3, pad=1) + bias + ReLU + maxpool(2x2, stride 2).

    lhs_ref : [ROWS, K_DIM] = [128, 64]   im2col-lite input slab
    w_ref   : [K_DIM, POOL*C_OUT] = [64, 64]  packed conv weights
    b_ref   : [1, C_OUT]                  conv bias
    o_ref   : [N, PH, PW, C_OUT]          pooled output (NHWC)
    """
    # One MXU dot produces the pre-pool conv result for all 4 pool positions:
    # output lanes enumerate (pool position, out channel).
    acc = jnp.dot(lhs_ref[...], w_ref[...], preferred_element_type=jnp.float32)

    # 2x2 max-pool == elementwise max over the 4 pool-position lane groups.
    m = jnp.maximum(
        jnp.maximum(acc[:, 0 * C_OUT:1 * C_OUT], acc[:, 1 * C_OUT:2 * C_OUT]),
        jnp.maximum(acc[:, 2 * C_OUT:3 * C_OUT], acc[:, 3 * C_OUT:4 * C_OUT]))

    # Bias + ReLU once (hoisted; exact because max/ReLU/shared-bias commute).
    y = jnp.maximum(m + b_ref[...], 0.0)
    o_ref[...] = y.reshape(N, PH, PW, C_OUT)


def _combine_weights(w_oihw):
    """torch [Cout,Cin,KH,KW] -> [2,2, (a,b,ci)=16, (dh,dw,co)=64] blocks.

    Block (qh, qw) maps space-to-depth lane (a, b, ci) to output
    (pool position (dh, dw), channel co) with tap kh = 2*qh + a - dh,
    kw = 2*qw + b - dw; out-of-range taps are zero (via padded weight).
    """
    w_k = jnp.transpose(w_oihw, (2, 3, 1, 0))                   # [KH,KW,CIN,COUT]
    w_pad = jnp.pad(w_k, ((1, 1), (1, 1), (0, 0), (0, 0)))      # [5,5,CIN,COUT]
    q = np.arange(2)
    # idx[q, s, d] = 2*q + s - d + 1  (maps into the zero-padded tap axis)
    idx = (2 * q[:, None, None] + q[None, :, None] - q[None, None, :]) + 1
    idx_h = idx[:, None, :, None, :, None]       # (qh, qw, a, b, dh, dw)
    idx_w = idx[None, :, None, :, None, :]
    wb = w_pad[idx_h, idx_w]                     # [2,2,2,2,2,2,CIN,COUT]
    wb = wb.transpose(0, 1, 2, 3, 6, 4, 5, 7)    # (qh,qw,a,b,ci,dh,dw,co)
    return wb.reshape(2, 2, S2D_C, POOL * C_OUT)


def prepare_weights(w_oihw, bias):
    """One-time weight packing (hoisted out of the per-call forward path).

    Row order of w_flat (qh major, qw, then (a,b,ci)) must match the window
    concat order used to build the LHS slab in vgg_client_forward.
    """
    w_flat = _combine_weights(w_oihw).reshape(K_DIM, POOL * C_OUT)  # [64, 64]
    b_mat = bias.reshape(1, C_OUT)
    return w_flat, b_mat


@jax.jit
def vgg_client_forward(x_nchw, w_flat, b_mat):
    """Pallas implementation of VGG_client_test.forward. Returns NCHW."""
    # Input prep (fused under jit, 1x data, ~5 KB): NCHW -> NHWC, pad=1,
    # 2x2 space-to-depth, then concatenate the four overlapping 8x8 windows
    # along the channel axis -> the [ROWS, 64] im2col-lite LHS slab.
    x_nhwc = jnp.transpose(x_nchw, (0, 2, 3, 1))
    xp = jnp.pad(x_nhwc, ((0, 0), (1, 1), (1, 1), (0, 0)))      # [N,H+2,W+2,C]
    xs = xp.reshape(N, HS, 2, WS, 2, C_IN).transpose(0, 1, 3, 2, 4, 5)
    xs = xs.reshape(N, HS, WS, S2D_C)                           # [N,9,9,16]
    lhs = jnp.concatenate(
        [xs[:, qh:qh + PH, qw:qw + PW, :] for qh in range(2) for qw in range(2)],
        axis=-1).reshape(ROWS, K_DIM)                           # [128,64]

    out_nhwc = pl.pallas_call(
        conv_relu_pool_kernel,
        out_shape=jax.ShapeDtypeStruct((N, PH, PW, C_OUT), jnp.float32),
    )(lhs, w_flat, b_mat)

    # Kept only for PyTorch NCHW output parity.
    return jnp.transpose(out_nhwc, (0, 3, 1, 2))


def reference_forward(x_nchw, w_oihw, bias):
    """Plain-JAX reference mirroring the PyTorch ops (NCHW)."""
    y = lax.conv_general_dilated(
        x_nchw, w_oihw, window_strides=(1, 1), padding=((1, 1), (1, 1)),
        dimension_numbers=("NCHW", "OIHW", "NCHW"))
    y = y + bias.reshape(1, C_OUT, 1, 1)
    y = jnp.maximum(y, 0.0)
    y = lax.reduce_window(y, -jnp.inf, lax.max,
                          (1, 1, 2, 2), (1, 1, 2, 2), "VALID")
    return y


if __name__ == "__main__":
    key = jax.random.PRNGKey(0)
    kx, kw_key = jax.random.split(key)

    x = jax.random.normal(kx, (N, C_IN, H, W), dtype=jnp.float32)

    # Conv2d init from VGG_client_test.__init__:
    #   n = kh * kw * out_channels ; weight ~ N(0, sqrt(2/n)) ; bias = 0
    fan = KH * KW * C_OUT
    w_conv = (jax.random.normal(kw_key, (C_OUT, C_IN, KH, KW), dtype=jnp.float32)
              * math.sqrt(2.0 / fan))
    b_conv = jnp.zeros((C_OUT,), dtype=jnp.float32)

    # Weight packing happens once, outside the per-call forward path.
    w_flat, b_mat = prepare_weights(w_conv, b_conv)

    out = jax.block_until_ready(vgg_client_forward(x, w_flat, b_mat))
    ref = jax.block_until_ready(reference_forward(x, w_conv, b_conv))

    assert out.shape == (N, C_OUT, PH, PW), out.shape
    assert jnp.allclose(out, ref, rtol=1e-5, atol=2e-5), (
        float(jnp.max(jnp.abs(out - ref))))
    print("KERNEL_OK")
</pallas_src>

<mosaic_0001>
module attributes {stable_mosaic.version = 11 : i64} {
  func.func @conv_relu_pool_kernel(%arg0: memref<128x64xf32, #tpu.memory_space<vmem>>, %arg1: memref<64x64xf32, #tpu.memory_space<vmem>>, %arg2: memref<1x16xf32, #tpu.memory_space<vmem>>, %arg3: memref<2x8x8x16xf32, #tpu.memory_space<vmem>>) attributes {dimension_semantics = [], scalar_prefetch = 0 : i64, scratch_operands = 0 : i64, tpu.core_type = #tpu.core_type<tc>} {
    %c0 = arith.constant 0 : index
    %c0_0 = arith.constant 0 : index
    %0 = vector.load %arg0[%c0, %c0_0] : memref<128x64xf32, #tpu.memory_space<vmem>>, vector<128x64xf32>
    %c0_1 = arith.constant 0 : index
    %c0_2 = arith.constant 0 : index
    %1 = vector.load %arg1[%c0_1, %c0_2] : memref<64x64xf32, #tpu.memory_space<vmem>>, vector<64x64xf32>
    %cst = arith.constant dense<0.000000e+00> : vector<128x64xf32>
    %2 = tpu.matmul %0, %1, %cst {dimension_numbers = #tpu.dot_dimension_numbers<[1], [0], [0], [1], [0, 0, 1, 1], [], []>} : vector<128x64xf32>, vector<64x64xf32>, vector<128x64xf32> -> vector<128x64xf32>
    %3 = vector.extract_strided_slice %2 {offsets = [0, 0], sizes = [128, 16], strides = [1, 1]} : vector<128x64xf32> to vector<128x16xf32>
    %4 = vector.extract_strided_slice %2 {offsets = [0, 16], sizes = [128, 16], strides = [1, 1]} : vector<128x64xf32> to vector<128x16xf32>
    %5 = arith.maximumf %3, %4 : vector<128x16xf32>
    %6 = vector.extract_strided_slice %2 {offsets = [0, 32], sizes = [128, 16], strides = [1, 1]} : vector<128x64xf32> to vector<128x16xf32>
    %7 = vector.extract_strided_slice %2 {offsets = [0, 48], sizes = [128, 16], strides = [1, 1]} : vector<128x64xf32> to vector<128x16xf32>
    %8 = arith.maximumf %6, %7 : vector<128x16xf32>
    %9 = arith.maximumf %5, %8 : vector<128x16xf32>
    %c0_3 = arith.constant 0 : index
    %c0_4 = arith.constant 0 : index
    %10 = vector.load %arg2[%c0_3, %c0_4] : memref<1x16xf32, #tpu.memory_space<vmem>>, vector<1x16xf32>
    %11 = vector.broadcast %10 : vector<1x16xf32> to vector<128x16xf32>
    %12 = arith.addf %9, %11 : vector<128x16xf32>
    %cst_5 = arith.constant 0.000000e+00 : f32
    %13 = vector.broadcast %cst_5 : f32 to vector<128x16xf32>
    %14 = arith.maximumf %12, %13 : vector<128x16xf32>
    %15 = vector.shape_cast %14 : vector<128x16xf32> to vector<2x8x8x16xf32>
    %c0_6 = arith.constant 0 : index
    %c0_7 = arith.constant 0 : index
    %c0_8 = arith.constant 0 : index
    %c0_9 = arith.constant 0 : index
    %16 = vector.load %arg3[%c0_6, %c0_7, %c0_8, %c0_9] : memref<2x8x8x16xf32, #tpu.memory_space<vmem>>, vector<2x8x8x16xf32>
    tpu.vector_store %arg3[%c0_6, %c0_7, %c0_8, %c0_9], %15 {strides = array<i32>} : memref<2x8x8x16xf32, #tpu.memory_space<vmem>>, vector<2x8x8x16xf32>,
    return
  }
}

</mosaic_0001>

<llo_original>
// kernel: vgg_client_forward.1
$region0: #{vgg_client_forward.1}
  #allocation0 [shape = 'u32[]', space=smem, size = 0x4, offset = 0x4, fixed_abs, tag = 'smem constant byte address 0x4 - core index']
  #allocation1 [shape = 'u32[144,128]{1,0:T(1,128)}', space=vmem, size = 0x12000, scoped, tag = 'internal scratch']
  %s0 = inlined_call_operand.vmem [shape: f32[128,64], index: 0, kind: input, shape index: {}]
  %s1 = inlined_call_operand.vmem [shape: f32[64,64], index: 1, kind: input, shape index: {}]
  %s2 = inlined_call_operand.vmem [shape: f32[1,16], index: 2, kind: input, shape index: {}]
  %s3 = inlined_call_operand.hbm [shape: f32[2,8,8,16], index: 3, kind: output, shape index: {}]
  %s4 = sld [smem:[#allocation0]]
  $region22: #{vgg_client_forward.1} parent=0
    _
  %s6 = ssub.s32 1, %s4
  %s7 = scalar_select 0, %s6, %s4
  $region1: #{vgg_client_forward.1} parent=0
    #allocation2 [shape = 'u8[65536]{0}', space=vmem, size = 0x10000, scoped, tag = 'output window, operand 0, single buffered']
    #allocation3 [shape = 's32[1]{0}', space=sflag, size = 0x4, scoped, tag = 'scoped memory for vgg_client_forward.1']
    %8 = vsyncpa [#allocation3], 0
    // Predicated region
    $region2: #{vgg_client_forward.1} parent=1 // pred_check
      _
    $region3: #{vgg_client_forward.1} parent=1 // pred_check_branch
      %10 = sbr.rel (0) target = $region5
    $region4: #{vgg_client_forward.1} parent=1 // pred_region
      _
    $region5: #{vgg_client_forward.1} parent=1 // pred_fallthru
      _
    // Predicated region
    $region6: #{vgg_client_forward.1} parent=1 // pred_check
      _
    $region7: #{vgg_client_forward.1} parent=1 // pred_check_branch
      %12 = sbr.rel (0) target = $region9
    $region8: #{vgg_client_forward.1} parent=1 // pred_region
      _
    $region9: #{vgg_client_forward.1} parent=1 // pred_fallthru
      _
    // Predicated region
    $region10: #{vgg_client_forward.1} parent=1 // pred_check
      _
    $region11: #{vgg_client_forward.1} parent=1 // pred_check_branch
      %14 = sbr.rel (0) target = $region13
    $region12: #{vgg_client_forward.1} parent=1 // pred_region
      _
    $region13: #{vgg_client_forward.1} parent=1 // pred_fallthru
      _
    %v15 = vld [vmem:[%s0] sm:$0xff]
    %v16 = vld [vmem:[%s0 + $0x8] sm:$0xff]
    %v17 = vld [vmem:[%s0 + $0x10] sm:$0xff]
    %v18 = vld [vmem:[%s0 + $0x18] sm:$0xff]
    %v19 = vld [vmem:[%s0 + $0x20] sm:$0xff]
    %v20 = vld [vmem:[%s0 + $0x28] sm:$0xff]
    %v21 = vld [vmem:[%s0 + $0x30] sm:$0xff]
    %v22 = vld [vmem:[%s0 + $0x38] sm:$0xff]
    %v23 = vld [vmem:[%s0 + $0x40] sm:$0xff]
    %v24 = vld [vmem:[%s0 + $0x48] sm:$0xff]
    %v25 = vld [vmem:[%s0 + $0x50] sm:$0xff]
    %v26 = vld [vmem:[%s0 + $0x58] sm:$0xff]
    %v27 = vld [vmem:[%s0 + $0x60] sm:$0xff]
    %v28 = vld [vmem:[%s0 + $0x68] sm:$0xff]
    %v29 = vld [vmem:[%s0 + $0x70] sm:$0xff]
    %v30 = vld [vmem:[%s0 + $0x78] sm:$0xff]
    %v31 = vld [vmem:[%s1] sm:$0xff]
    %v32 = vld [vmem:[%s1 + $0x8] sm:$0xff]
    %v33 = vld [vmem:[%s1 + $0x10] sm:$0xff]
    %v34 = vld [vmem:[%s1 + $0x18] sm:$0xff]
    %v35 = vld [vmem:[%s1 + $0x20] sm:$0xff]
    %v36 = vld [vmem:[%s1 + $0x28] sm:$0xff]
    %v37 = vld [vmem:[%s1 + $0x30] sm:$0xff]
    %v38 = vld [vmem:[%s1 + $0x38] sm:$0xff]
    %vm39 = vcmask 523264
    %v41 = vsel %vm39, %v15, 0
    %v44 = vsel %vm39, %v16, 0
    %v47 = vsel %vm39, %v17, 0
    %v50 = vsel %vm39, %v18, 0
    %v53 = vsel %vm39, %v19, 0
    %v56 = vsel %vm39, %v20, 0
    %v59 = vsel %vm39, %v21, 0
    %v62 = vsel %vm39, %v22, 0
    %v65 = vsel %vm39, %v23, 0
    %v68 = vsel %vm39, %v24, 0
    %v71 = vsel %vm39, %v25, 0
    %v74 = vsel %vm39, %v26, 0
    %v77 = vsel %vm39, %v27, 0
    %v80 = vsel %vm39, %v28, 0
    %v83 = vsel %vm39, %v29, 0
    %v86 = vsel %vm39, %v30, 0
    %88 = vmatprep.subr.mxu0 0.0
    %89 = vmatpush1.msra.mxu0 0.0
    %90 = vmatprep.subr.mxu0 0.0
    %91 = vmatpush1.msra.mxu0 0.0
    %92 = vmatprep.subr.mxu0 0.0
    %93 = vmatpush1.msra.mxu0 0.0
    %94 = vmatprep.subr.mxu0 0.0
    %95 = vmatpush1.msra.mxu0 0.0
    %96 = vmatprep.subr.mxu0 0.0
    %97 = vmatpush1.msra.mxu0 0.0
    %98 = vmatprep.subr.mxu0 0.0
    %99 = vmatpush1.msra.mxu0 0.0
    %100 = vmatprep.subr.mxu0 0.0
    %101 = vmatpush1.msra.mxu0 0.0
    %102 = vmatprep.subr.mxu0 0.0
    %103 = vmatpush1.msra.mxu0 0.0
    %104 = vmatprep.subr.mxu0 0.0
    %105 = vmatpush1.msra.mxu0 %v38
    %106 = vmatprep.subr.mxu0 0.0
    %107 = vmatpush1.msra.mxu0 %v37
    %108 = vmatprep.subr.mxu0 0.0
    %109 = vmatpush1.msra.mxu0 %v36
    %110 = vmatprep.subr.mxu0 0.0
    %111 = vmatpush1.msra.mxu0 %v35
    %112 = vmatprep.subr.mxu0 0.0
    %113 = vmatpush1.msra.mxu0 %v34
    %114 = vmatprep.subr.mxu0 0.0
    %115 = vmatpush1.msra.mxu0 %v33
    %116 = vmatprep.subr.mxu0 0.0
    %117 = vmatpush1.msra.mxu0 %v32
    %118 = vmatprep.subr.mxu0 0.0
    %119 = vmatpush1.msra.mxu0 %v31
    %120 = vmatprep.subr.mxu0 0.0
    %121 = vmatpush2.msra.mxu0 0.0
    %122 = vmatprep.subr.mxu0 0.0
    %123 = vmatpush2.msra.mxu0 0.0
    %124 = vmatprep.subr.mxu0 0.0
    %125 = vmatpush2.msra.mxu0 0.0
    %126 = vmatprep.subr.mxu0 0.0
    %127 = vmatpush2.msra.mxu0 0.0
    %128 = vmatprep.subr.mxu0 0.0
    %129 = vmatpush2.msra.mxu0 0.0
    %130 = vmatprep.subr.mxu0 0.0
    %131 = vmatpush2.msra.mxu0 0.0
    %132 = vmatprep.subr.mxu0 0.0
    %133 = vmatpush2.msra.mxu0 0.0
    %134 = vmatprep.subr.mxu0 0.0
    %135 = vmatpush2.msra.mxu0 0.0
    %136 = vmatprep.subr.mxu0 0.0
    %137 = vmatpush2.msra.mxu0 0.0
    %138 = vmatprep.subr.mxu0 0.0
    %139 = vmatpush2.msra.mxu0 0.0
    %140 = vmatprep.subr.mxu0 0.0
    %141 = vmatpush2.msra.mxu0 0.0
    %142 = vmatprep.subr.mxu0 0.0
    %143 = vmatpush2.msra.mxu0 0.0
    %144 = vmatprep.subr.mxu0 0.0
    %145 = vmatpush2.msra.mxu0 0.0
    %146 = vmatprep.subr.mxu0 0.0
    %147 = vmatpush2.msra.mxu0 0.0
    %148 = vmatprep.subr.mxu0 0.0
    %149 = vmatpush2.msra.mxu0 0.0
    %150 = vmatprep.subr.mxu0 0.0
    %151 = vmatpush2.msra.mxu0 0.0
    %152 = vmatprep.mubr.f32.mxu0 0.0
    %153 = vmatmul.mubr.f32.gmra.mxu0 %v41
    %v154 = vpop.f32.mrf.mxu0
    %v155 = vadd.f32 0.0, %v154
    %v156 = vpop.f32.mrf.mxu0
    %157 = vmatprep.mubr.f32.mxu0 0.0
    %158 = vmatmul.mubr.f32.gmra.mxu0 %v44
    %v159 = vpop.f32.mrf.mxu0
    %v160 = vadd.f32 0.0, %v159
    %v161 = vpop.f32.mrf.mxu0
    %162 = vmatprep.mubr.f32.mxu0 0.0
    %163 = vmatmul.mubr.f32.gmra.mxu0 %v47
    %v164 = vpop.f32.mrf.mxu0
    %v165 = vadd.f32 0.0, %v164
    %v166 = vpop.f32.mrf.mxu0
    %167 = vmatprep.mubr.f32.mxu0 0.0
    %168 = vmatmul.mubr.f32.gmra.mxu0 %v50
    %v169 = vpop.f32.mrf.mxu0
    %v170 = vadd.f32 0.0, %v169
    %v171 = vpop.f32.mrf.mxu0
    %172 = vmatprep.mubr.f32.mxu0 0.0
    %173 = vmatmul.mubr.f32.gmra.mxu0 %v53
    %v174 = vpop.f32.mrf.mxu0
    %v175 = vadd.f32 0.0, %v174
    %v176 = vpop.f32.mrf.mxu0
    %177 = vmatprep.mubr.f32.mxu0 0.0
    %178 = vmatmul.mubr.f32.gmra.mxu0 %v56
    %v179 = vpop.f32.mrf.mxu0
    %v180 = vadd.f32 0.0, %v179
    %v181 = vpop.f32.mrf.mxu0
    %182 = vmatprep.mubr.f32.mxu0 0.0
    %183 = vmatmul.mubr.f32.gmra.mxu0 %v59
    %v184 = vpop.f32.mrf.mxu0
    %v185 = vadd.f32 0.0, %v184
    %v186 = vpop.f32.mrf.mxu0
    %187 = vmatprep.mubr.f32.mxu0 0.0
    %188 = vmatmul.mubr.f32.gmra.mxu0 %v62
    %v189 = vpop.f32.mrf.mxu0
    %v190 = vadd.f32 0.0, %v189
    %v191 = vpop.f32.mrf.mxu0
    %192 = vmatprep.mubr.f32.mxu0 0.0
    %193 = vmatmul.mubr.f32.gmra.mxu0 %v65
    %v194 = vpop.f32.mrf.mxu0
    %v195 = vadd.f32 0.0, %v194
    %v196 = vpop.f32.mrf.mxu0
    %197 = vmatprep.mubr.f32.mxu0 0.0
    %198 = vmatmul.mubr.f32.gmra.mxu0 %v68
    %v199 = vpop.f32.mrf.mxu0
    %v200 = vadd.f32 0.0, %v199
    %v201 = vpop.f32.mrf.mxu0
    %202 = vmatprep.mubr.f32.mxu0 0.0
    %203 = vmatmul.mubr.f32.gmra.mxu0 %v71
    %v204 = vpop.f32.mrf.mxu0
    %v205 = vadd.f32 0.0, %v204
    %v206 = vpop.f32.mrf.mxu0
    %207 = vmatprep.mubr.f32.mxu0 0.0
    %208 = vmatmul.mubr.f32.gmra.mxu0 %v74
    %v209 = vpop.f32.mrf.mxu0
    %v210 = vadd.f32 0.0, %v209
    %v211 = vpop.f32.mrf.mxu0
    %212 = vmatprep.mubr.f32.mxu0 0.0
    %213 = vmatmul.mubr.f32.gmra.mxu0 %v77
    %v214 = vpop.f32.mrf.mxu0
    %v215 = vadd.f32 0.0, %v214
    %v216 = vpop.f32.mrf.mxu0
    %217 = vmatprep.mubr.f32.mxu0 0.0
    %218 = vmatmul.mubr.f32.gmra.mxu0 %v80
    %v219 = vpop.f32.mrf.mxu0
    %v220 = vadd.f32 0.0, %v219
    %v221 = vpop.f32.mrf.mxu0
    %222 = vmatprep.mubr.f32.mxu0 0.0
    %223 = vmatmul.mubr.f32.gmra.mxu0 %v83
    %v224 = vpop.f32.mrf.mxu0
    %v225 = vadd.f32 0.0, %v224
    %v226 = vpop.f32.mrf.mxu0
    %227 = vmatprep.mubr.f32.mxu0 0.0
    %228 = vmatmul.mubr.f32.gmra.mxu0 %v86
    %v229 = vpop.f32.mrf.mxu0
    %v230 = vadd.f32 0.0, %v229
    %v231 = vpop.f32.mrf.mxu0
    %232 = vdwg.mxu0
    %249 = vrot.lane.b32.xlu0 %v155, 112
    %v250 = vpop.permute.xlu0 %249
    %251 = vrot.lane.b32.xlu0 %v160, 112
    %v252 = vpop.permute.xlu0 %251
    %253 = vrot.lane.b32.xlu0 %v165, 112
    %v254 = vpop.permute.xlu0 %253
    %255 = vrot.lane.b32.xlu0 %v170, 112
    %v256 = vpop.permute.xlu0 %255
    %257 = vrot.lane.b32.xlu0 %v175, 112
    %v258 = vpop.permute.xlu0 %257
    %259 = vrot.lane.b32.xlu0 %v180, 112
    %v260 = vpop.permute.xlu0 %259
    %261 = vrot.lane.b32.xlu0 %v185, 112
    %v262 = vpop.permute.xlu0 %261
    %263 = vrot.lane.b32.xlu0 %v190, 112
    %v264 = vpop.permute.xlu0 %263
    %265 = vrot.lane.b32.xlu0 %v195, 112
    %v266 = vpop.permute.xlu0 %265
    %267 = vrot.lane.b32.xlu0 %v200, 112
    %v268 = vpop.permute.xlu0 %267
    %269 = vrot.lane.b32.xlu0 %v205, 112
    %v270 = vpop.permute.xlu0 %269
    %271 = vrot.lane.b32.xlu0 %v210, 112
    %v272 = vpop.permute.xlu0 %271
    %273 = vrot.lane.b32.xlu0 %v215, 112
    %v274 = vpop.permute.xlu0 %273
    %275 = vrot.lane.b32.xlu0 %v220, 112
    %v276 = vpop.permute.xlu0 %275
    %277 = vrot.lane.b32.xlu0 %v225, 112
    %v278 = vpop.permute.xlu0 %277
    %279 = vrot.lane.b32.xlu0 %v230, 112
    %v280 = vpop.permute.xlu0 %279
    %v297 = vmax.f32 %v155, %v250
    %v298 = vmax.f32 %v160, %v252
    %v299 = vmax.f32 %v165, %v254
    %v300 = vmax.f32 %v170, %v256
    %v301 = vmax.f32 %v175, %v258
    %v302 = vmax.f32 %v180, %v260
    %v303 = vmax.f32 %v185, %v262
    %v304 = vmax.f32 %v190, %v264
    %v305 = vmax.f32 %v195, %v266
    %v306 = vmax.f32 %v200, %v268
    %v307 = vmax.f32 %v205, %v270
    %v308 = vmax.f32 %v210, %v272
    %v309 = vmax.f32 %v215, %v274
    %v310 = vmax.f32 %v220, %v276
    %v311 = vmax.f32 %v225, %v278
    %v312 = vmax.f32 %v230, %v280
    %329 = vrot.lane.b32.xlu0 %v297, 96
    %v330 = vpop.permute.xlu0 %329
    %331 = vrot.lane.b32.xlu0 %v298, 96
    %v332 = vpop.permute.xlu0 %331
    %333 = vrot.lane.b32.xlu0 %v299, 96
    %v334 = vpop.permute.xlu0 %333
    %335 = vrot.lane.b32.xlu0 %v300, 96
    %v336 = vpop.permute.xlu0 %335
    %337 = vrot.lane.b32.xlu0 %v301, 96
    %v338 = vpop.permute.xlu0 %337
    %339 = vrot.lane.b32.xlu0 %v302, 96
    %v340 = vpop.permute.xlu0 %339
    %341 = vrot.lane.b32.xlu0 %v303, 96
    %v342 = vpop.permute.xlu0 %341
    %343 = vrot.lane.b32.xlu0 %v304, 96
    %v344 = vpop.permute.xlu0 %343
    %345 = vrot.lane.b32.xlu0 %v305, 96
    %v346 = vpop.permute.xlu0 %345
    %347 = vrot.lane.b32.xlu0 %v306, 96
    %v348 = vpop.permute.xlu0 %347
    %349 = vrot.lane.b32.xlu0 %v307, 96
    %v350 = vpop.permute.xlu0 %349
    %351 = vrot.lane.b32.xlu0 %v308, 96
    %v352 = vpop.permute.xlu0 %351
    %353 = vrot.lane.b32.xlu0 %v309, 96
    %v354 = vpop.permute.xlu0 %353
    %355 = vrot.lane.b32.xlu0 %v310, 96
    %v356 = vpop.permute.xlu0 %355
    %357 = vrot.lane.b32.xlu0 %v311, 96
    %v358 = vpop.permute.xlu0 %357
    %359 = vrot.lane.b32.xlu0 %v312, 96
    %v360 = vpop.permute.xlu0 %359
    %v377 = vmax.f32 %v297, %v330
    %v378 = vmax.f32 %v298, %v332
    %v379 = vmax.f32 %v299, %v334
    %v380 = vmax.f32 %v300, %v336
    %v381 = vmax.f32 %v301, %v338
    %v382 = vmax.f32 %v302, %v340
    %v383 = vmax.f32 %v303, %v342
    %v384 = vmax.f32 %v304, %v344
    %v385 = vmax.f32 %v305, %v346
    %v386 = vmax.f32 %v306, %v348
    %v387 = vmax.f32 %v307, %v350
    %v388 = vmax.f32 %v308, %v352
    %v389 = vmax.f32 %v309, %v354
    %v390 = vmax.f32 %v310, %v356
    %v391 = vmax.f32 %v311, %v358
    %v392 = vmax.f32 %v312, %v360
    %v393 = vld [vmem:[%s2] sm:$0x1]
    %v395 = vlaneseq
    %v396 = vshrl.u32 %v395, 7
    %v397 = vsub.s32 0, %v396
    %v398 = vrot.slane %v393, %v397
    %v400 = vadd.f32 %v377, %v398
    %v401 = vadd.f32 %v378, %v398
    %v402 = vadd.f32 %v379, %v398
    %v403 = vadd.f32 %v380, %v398
    %v404 = vadd.f32 %v381, %v398
    %v405 = vadd.f32 %v382, %v398
    %v406 = vadd.f32 %v383, %v398
    %v407 = vadd.f32 %v384, %v398
    %v408 = vadd.f32 %v385, %v398
    %v409 = vadd.f32 %v386, %v398
    %v410 = vadd.f32 %v387, %v398
    %v411 = vadd.f32 %v388, %v398
    %v412 = vadd.f32 %v389, %v398
    %v413 = vadd.f32 %v390, %v398
    %v414 = vadd.f32 %v391, %v398
    %v415 = vadd.f32 %v392, %v398
    %v416 = vmax.f32 %v400, 0.0
    %v417 = vmax.f32 %v401, 0.0
    %v418 = vmax.f32 %v402, 0.0
    %v419 = vmax.f32 %v403, 0.0
    %v420 = vmax.f32 %v404, 0.0
    %v421 = vmax.f32 %v405, 0.0
    %v422 = vmax.f32 %v406, 0.0
    %v423 = vmax.f32 %v407, 0.0
    %v424 = vmax.f32 %v408, 0.0
    %v425 = vmax.f32 %v409, 0.0
    %v426 = vmax.f32 %v410, 0.0
    %v427 = vmax.f32 %v411, 0.0
    %v428 = vmax.f32 %v412, 0.0
    %v429 = vmax.f32 %v413, 0.0
    %v430 = vmax.f32 %v414, 0.0
    %v431 = vmax.f32 %v415, 0.0
    %vm432 = vcmask 130048
    %433 = vst.msk [vmem:[#allocation2] sm:$0xff] %vm432, %v416
    %434 = vst.msk [vmem:[#allocation2 + $0x8] sm:$0xff] %vm432, %v417
    %435 = vst.msk [vmem:[#allocation2 + $0x10] sm:$0xff] %vm432, %v418
    %436 = vst.msk [vmem:[#allocation2 + $0x18] sm:$0xff] %vm432, %v419
    %437 = vst.msk [vmem:[#allocation2 + $0x20] sm:$0xff] %vm432, %v420
    %438 = vst.msk [vmem:[#allocation2 + $0x28] sm:$0xff] %vm432, %v421
    %439 = vst.msk [vmem:[#allocation2 + $0x30] sm:$0xff] %vm432, %v422
    %440 = vst.msk [vmem:[#allocation2 + $0x38] sm:$0xff] %vm432, %v423
    %441 = vst.msk [vmem:[#allocation2 + $0x40] sm:$0xff] %vm432, %v424
    %442 = vst.msk [vmem:[#allocation2 + $0x48] sm:$0xff] %vm432, %v425
    %443 = vst.msk [vmem:[#allocation2 + $0x50] sm:$0xff] %vm432, %v426
    %444 = vst.msk [vmem:[#allocation2 + $0x58] sm:$0xff] %vm432, %v427
    %445 = vst.msk [vmem:[#allocation2 + $0x60] sm:$0xff] %vm432, %v428
    %446 = vst.msk [vmem:[#allocation2 + $0x68] sm:$0xff] %vm432, %v429
    %447 = vst.msk [vmem:[#allocation2 + $0x70] sm:$0xff] %vm432, %v430
    %448 = vst.msk [vmem:[#allocation2 + $0x78] sm:$0xff] %vm432, %v431
    // Predicated region
    $region14: #{vgg_client_forward.1} parent=1 // pred_check
      _
    $region15: #{vgg_client_forward.1} parent=1 // pred_check_branch
      %450 = sbr.rel (0) target = $region17
    $region16: #{vgg_client_forward.1} parent=1 // pred_region
      %s452 = ssub.s32 2048, 2048
      %453 = vsyncadd [#allocation3], %s452
      %s454 = sshll.u32 [#allocation2], 4
      %s455 = int_to_ptr.vmem [resolvable:$true] %s454
      %460 = dma.vmem_to_hbm [thread:$0]  %s455, 2048, %s3, [#allocation3], 128, 128, 8
    $region17: #{vgg_client_forward.1} parent=1 // pred_fallthru
      _
    // Predicated region
    $region18: #{vgg_client_forward.1} parent=1 // pred_check
      _
    $region19: #{vgg_client_forward.1} parent=1 // pred_check_branch
      %462 = sbr.rel (0) target = $region21
    $region20: #{vgg_client_forward.1} parent=1 // pred_region
      %463 = dma.done [#allocation3], 2048
    $region21: #{vgg_client_forward.1} parent=1 // pred_fallthru
      _
    %464 = vsyncpa [#allocation3], 1

</llo_original>
